<compile_context>
chip_gen: v7x
topology: tpu7x:2x2x1
jax: 0.10.0
libtpu: 0.0.40
codegen_flags: <defaults>
</compile_context>

<pallas_src>
import functools

import jax
import jax.numpy as jnp
from jax.experimental import pallas as pl
from jax.experimental.pallas import tpu as pltpu

LANE = 128
N_PARTIALS = 6  # rows of 8: [bce, focal, intersection, pred_sum, target_sum, boundary]


def _choose_r_tile(R, max_tile=512):
    """Largest divisor of R that is a multiple of 8 and <= max_tile (else R itself)."""
    if R <= max_tile:
        return R
    t = max_tile - (max_tile % 8)
    while t >= 8:
        if R % t == 0:
            return t
        t -= 8
    return R


def _rowsum8(a):
    """(R, LANE) -> (8, LANE) partial sum using only across-vreg VPU adds."""
    r = a.shape[0]
    pad = (-r) % 8
    if pad:
        a = jnp.concatenate([a, jnp.zeros((pad, LANE), a.dtype)], axis=0)
    return a.reshape(-1, 8, LANE).sum(axis=0)


def _loss_reduce_kernel(x_ref, t_ref, d_ref, out_ref, *, binary_targets):
    """Per-(sample, spatial-tile) elementwise math + lane-preserving partials.

    x_ref/t_ref/d_ref : (1, R_TILE, 128)   logits / targets / normalized distance map
    out_ref           : (1, 1, 48, 128)    six stacked (8,128) partial-sum blocks
    """
    x = x_ref[0].astype(jnp.float32)      # (R_TILE, 128)
    t = t_ref[0].astype(jnp.float32)
    d = d_ref[0].astype(jnp.float32)

    # One exp + one log1p + one reciprocal per element (EUP is the scarce slot).
    e = jnp.exp(-jnp.abs(x))
    sig = 1.0 / (1.0 + e)
    p = jnp.where(x >= 0.0, sig, 1.0 - sig)            # sigmoid(x)
    ce = jnp.maximum(x, 0.0) - x * t + jnp.log1p(e)    # BCE-with-logits (torch formulation)
    if binary_targets:
        # exp(-ce) == p^t * (1-p)^(1-t) == t*p + (1-t)*(1-p) for hard {0,1} targets.
        pt = t * p + (1.0 - t) * (1.0 - p)
    else:
        pt = jnp.exp(-ce)
    focal = jnp.square(1.0 - pt) * ce                  # alpha=1.0, gamma=2.0

    partials = (ce, focal, p * t, p, t, d * jnp.abs(p - t))
    for idx, a in enumerate(partials):
        out_ref[0, 0, idx * 8:(idx + 1) * 8, :] = _rowsum8(a)


def _distance_maps(targets_bhw):
    """Reproduce BoundaryLoss._compute_distance_transform in plain JAX (glue).

    cv2.erode(3x3) -> boundaries -> exact separable Euclidean distance transform
    -> per-sample max-normalization; empty-target samples get an all-zero map
    (they are skipped in the reference loop).
    """
    # TODO(synk): the EDT stays in plain JAX (scans + a per-row parabola min);
    # its data-dependent lower-envelope form has no clean Pallas primitive.
    B, H, W = targets_bhw.shape
    binary = (targets_bhw > 0.5).astype(jnp.float32)

    # cv2.erode with a 3x3 ones kernel == 3x3 min filter; out-of-bounds = +inf
    # matches cv2's default border handling for erosion.
    eroded = jax.lax.reduce_window(
        binary, jnp.inf, jax.lax.min,
        window_dimensions=(1, 3, 3), window_strides=(1, 1, 1),
        padding=((0, 0), (1, 1), (1, 1)))
    boundaries = binary - eroded
    bnd_sum = jnp.sum(boundaries, axis=(1, 2), keepdims=True)
    seeds = jnp.where(bnd_sum == 0, binary, boundaries) > 0.5      # (B, H, W) bool

    BIG = jnp.float32(1e4)  # larger than any realistic H or W

    # Pass 1: exact 1-D distance to the nearest seed along the row axis (per column)
    # via forward/backward scans.
    init = jnp.where(seeds, 0.0, BIG)                  # (B, H, W)
    xs = jnp.moveaxis(init, 1, 0)                      # (H, B, W)

    def step(carry, row):
        dnew = jnp.minimum(row, carry + 1.0)
        return dnew, dnew

    carry0 = jnp.full((B, W), BIG, jnp.float32)
    _, fwd = jax.lax.scan(step, carry0, xs)
    _, bwd = jax.lax.scan(step, carry0, xs[::-1])
    dcol = jnp.minimum(fwd, bwd[::-1])                 # (H, B, W)
    f = jnp.square(jnp.minimum(dcol, BIG))             # squared vertical distance

    # Pass 2: D^2(i, j) = min_j' ( f(i, j') + (j - j')^2 ), one row at a time
    # (peak memory O(B*W^2) instead of O(B*(H*W)^2)).
    jj = jnp.arange(W, dtype=jnp.float32)
    off2 = jnp.square(jj[:, None] - jj[None, :])       # (j, j')

    def row_step(_, f_row):                            # f_row: (B, W) over j'
        d2 = jnp.min(f_row[:, None, :] + off2[None, :, :], axis=-1)   # (B, W)
        return None, d2

    _, d2_rows = jax.lax.scan(row_step, None, f)       # (H, B, W)
    dist = jnp.sqrt(jnp.moveaxis(d2_rows, 0, 1))       # (B, H, W)

    m = jnp.max(dist, axis=(1, 2), keepdims=True)
    dist = jnp.where(m > 0, dist / (m + 1e-8), dist)

    nonzero = jnp.sum(binary, axis=(1, 2), keepdims=True) > 0
    return jnp.where(nonzero, dist, 0.0)


def combined_loss(inputs, targets, ce_weight=1.0, dice_weight=2.0,
                  boundary_weight=1.0, focal_weight=0.5, use_focal=True,
                  assume_binary_targets=True):
    B, C, H, W = inputs.shape
    assert C == 1, "CombinedLoss reference indexes channel 0 only"
    HW = H * W
    assert HW % LANE == 0
    R = HW // LANE
    r_tile = _choose_r_tile(R)
    n_rt = R // r_tile

    dist = _distance_maps(targets[:, 0].astype(jnp.float32))

    # No f32 pre-cast of the logits (HBM bytes dominate); binary targets and the
    # [0,1]-normalized distance map are fed as bf16 and widened inside the kernel.
    io_dtype = jnp.bfloat16 if assume_binary_targets else jnp.float32
    x3 = inputs.reshape(B, R, LANE)
    t3 = targets.reshape(B, R, LANE).astype(io_dtype)
    d3 = dist.reshape(B, R, LANE).astype(io_dtype)

    in_spec = pl.BlockSpec((1, r_tile, LANE), lambda b, rt: (b, rt, 0))
    out = pl.pallas_call(
        functools.partial(_loss_reduce_kernel,
                          binary_targets=assume_binary_targets),
        out_shape=jax.ShapeDtypeStruct((B, n_rt, N_PARTIALS * 8, LANE), jnp.float32),
        grid_spec=pltpu.PrefetchScalarGridSpec(
            num_scalar_prefetch=0,
            grid=(B, n_rt),
            in_specs=[in_spec, in_spec, in_spec],
            out_specs=pl.BlockSpec((1, 1, N_PARTIALS * 8, LANE),
                                   lambda b, rt: (b, rt, 0, 0)),
        ),
        compiler_params=pltpu.CompilerParams(
            dimension_semantics=("parallel", "parallel"),
            vmem_limit_bytes=32 * 1024 * 1024),
    )(x3, t3, d3)

    # Final (tiny) reductions + loss weighting in plain JAX.
    sums = out.reshape(B, n_rt, N_PARTIALS, 8, LANE).sum(axis=(1, 3, 4))   # (B, 6)
    n_elem = jnp.float32(B * C * H * W)

    bce_loss = jnp.sum(sums[:, 0]) / n_elem
    focal_loss = jnp.sum(sums[:, 1]) / n_elem

    smooth = jnp.float32(1e-6)
    inter, psum, tsum = sums[:, 2], sums[:, 3], sums[:, 4]
    dice = (2.0 * inter + smooth) / (psum + tsum + smooth)
    dice_loss = 1.0 - jnp.mean(dice)

    boundary_loss = jnp.sum(sums[:, 5]) / jnp.float32(HW) / jnp.float32(max(B, 1))

    total = (ce_weight * bce_loss + dice_weight * dice_loss
             + boundary_weight * boundary_loss)
    losses = {"bce": bce_loss, "dice": dice_loss, "boundary": boundary_loss}
    if use_focal:
        losses["focal"] = focal_loss
        total = total + focal_weight * focal_loss
    return total, losses


if __name__ == "__main__":
    key = jax.random.PRNGKey(0)
    k1, k2 = jax.random.split(key)
    B, C, H, W = 2, 1, 16, 16
    logits = jax.random.normal(k1, (B, C, H, W), dtype=jnp.float32)
    targets = (jax.random.uniform(k2, (B, C, H, W)) > 0.6).astype(jnp.float32)

    loss_fn = jax.jit(combined_loss)
    total, losses = loss_fn(logits, targets)
    jax.block_until_ready(total)
    _ = {k: float(v) for k, v in losses.items()}  # force materialization of the dict too
    print("KERNEL_OK")
</pallas_src>

<mosaic_0001>
module attributes {stable_mosaic.version = 11 : i64} {
  func.func @_loss_reduce_kernel(%arg0: i32, %arg1: i32, %arg2: memref<1x2x128xf32, #tpu.memory_space<vmem>>, %arg3: memref<1x2x128xbf16, #tpu.memory_space<vmem>>, %arg4: memref<1x2x128xbf16, #tpu.memory_space<vmem>>, %arg5: memref<1x1x48x128xf32, #tpu.memory_space<vmem>>) attributes {dimension_semantics = [#tpu.dimension_semantics<parallel>, #tpu.dimension_semantics<parallel>], iteration_bounds = array<i64: 2, 1>, scalar_prefetch = 0 : i64, scratch_operands = 0 : i64, tpu.core_type = #tpu.core_type<tc>, window_params = [{transform_indices = @transform_0, window_bounds = array<i64: 1, 2, 128>}, {transform_indices = @transform_1, window_bounds = array<i64: 1, 2, 128>}, {transform_indices = @transform_2, window_bounds = array<i64: 1, 2, 128>}, {transform_indices = @transform_3, window_bounds = array<i64: 1, 1, 48, 128>}]} {
    %c0 = arith.constant 0 : index
    %c0_0 = arith.constant 0 : index
    %c0_1 = arith.constant 0 : index
    %0 = vector.load %arg2[%c0, %c0_0, %c0_1] : memref<1x2x128xf32, #tpu.memory_space<vmem>>, vector<1x2x128xf32>
    %1 = vector.shape_cast %0 : vector<1x2x128xf32> to vector<2x128xf32>
    %c0_2 = arith.constant 0 : index
    %c0_3 = arith.constant 0 : index
    %c0_4 = arith.constant 0 : index
    %2 = vector.load %arg3[%c0_2, %c0_3, %c0_4] : memref<1x2x128xbf16, #tpu.memory_space<vmem>>, vector<1x2x128xbf16>
    %3 = vector.shape_cast %2 : vector<1x2x128xbf16> to vector<2x128xbf16>
    %4 = arith.extf %3 : vector<2x128xbf16> to vector<2x128xf32>
    %c0_5 = arith.constant 0 : index
    %c0_6 = arith.constant 0 : index
    %c0_7 = arith.constant 0 : index
    %5 = vector.load %arg4[%c0_5, %c0_6, %c0_7] : memref<1x2x128xbf16, #tpu.memory_space<vmem>>, vector<1x2x128xbf16>
    %6 = vector.shape_cast %5 : vector<1x2x128xbf16> to vector<2x128xbf16>
    %7 = arith.extf %6 : vector<2x128xbf16> to vector<2x128xf32>
    %8 = math.absf %1 : vector<2x128xf32>
    %cst = arith.constant 0.000000e+00 : f32
    %9 = vector.broadcast %cst : f32 to vector<2x128xf32>
    %10 = arith.subf %9, %8 : vector<2x128xf32>
    %11 = math.exp %10 : vector<2x128xf32>
    %cst_8 = arith.constant 1.000000e+00 : f32
    %12 = vector.broadcast %cst_8 : f32 to vector<2x128xf32>
    %13 = arith.addf %12, %11 : vector<2x128xf32>
    %cst_9 = arith.constant 1.000000e+00 : f32
    %14 = vector.broadcast %cst_9 : f32 to vector<2x128xf32>
    %15 = arith.divf %14, %13 : vector<2x128xf32>
    %cst_10 = arith.constant 0.000000e+00 : f32
    %16 = vector.broadcast %cst_10 : f32 to vector<2x128xf32>
    %17 = arith.cmpf oge, %1, %16 : vector<2x128xf32>
    %cst_11 = arith.constant 1.000000e+00 : f32
    %18 = vector.broadcast %cst_11 : f32 to vector<2x128xf32>
    %19 = arith.subf %18, %15 : vector<2x128xf32>
    %20 = arith.select %17, %15, %19 : vector<2x128xi1>, vector<2x128xf32>
    %cst_12 = arith.constant 0.000000e+00 : f32
    %21 = vector.broadcast %cst_12 : f32 to vector<2x128xf32>
    %22 = arith.maximumf %1, %21 : vector<2x128xf32>
    %23 = arith.mulf %1, %4 : vector<2x128xf32>
    %24 = arith.subf %22, %23 : vector<2x128xf32>
    %25 = math.log1p %11 : vector<2x128xf32>
    %26 = arith.addf %24, %25 : vector<2x128xf32>
    %27 = arith.mulf %4, %20 : vector<2x128xf32>
    %cst_13 = arith.constant 1.000000e+00 : f32
    %28 = vector.broadcast %cst_13 : f32 to vector<2x128xf32>
    %29 = arith.subf %28, %4 : vector<2x128xf32>
    %cst_14 = arith.constant 1.000000e+00 : f32
    %30 = vector.broadcast %cst_14 : f32 to vector<2x128xf32>
    %31 = arith.subf %30, %20 : vector<2x128xf32>
    %32 = arith.mulf %29, %31 : vector<2x128xf32>
    %33 = arith.addf %27, %32 : vector<2x128xf32>
    %cst_15 = arith.constant 1.000000e+00 : f32
    %34 = vector.broadcast %cst_15 : f32 to vector<2x128xf32>
    %35 = arith.subf %34, %33 : vector<2x128xf32>
    %36 = arith.mulf %35, %35 : vector<2x128xf32>
    %37 = arith.mulf %36, %26 : vector<2x128xf32>
    %38 = arith.mulf %20, %4 : vector<2x128xf32>
    %39 = arith.subf %20, %4 : vector<2x128xf32>
    %40 = math.absf %39 : vector<2x128xf32>
    %41 = arith.mulf %7, %40 : vector<2x128xf32>
    %cst_16 = arith.constant 0.000000e+00 : f32
    %42 = vector.broadcast %cst_16 : f32 to vector<6x128xf32>
    %43 = tpu.concatenate %26, %42 in 0 : vector<2x128xf32>, vector<6x128xf32> -> vector<8x128xf32>
    %44 = vector.shape_cast %43 : vector<8x128xf32> to vector<1x8x128xf32>
    %cst_17 = arith.constant dense<0.000000e+00> : vector<8x128xf32>
    %45 = vector.multi_reduction <add>, %44, %cst_17 [0] : vector<1x8x128xf32> to vector<8x128xf32>
    %c0_18 = arith.constant 0 : index
    %c0_19 = arith.constant 0 : index
    %c0_20 = arith.constant 0 : index
    %c0_21 = arith.constant 0 : index
    %46 = vector.load %arg5[%c0_18, %c0_19, %c0_20, %c0_21] : memref<1x1x48x128xf32, #tpu.memory_space<vmem>>, vector<1x1x8x128xf32>
    %47 = vector.shape_cast %46 : vector<1x1x8x128xf32> to vector<8x128xf32>
    %48 = vector.shape_cast %45 : vector<8x128xf32> to vector<1x1x8x128xf32>
    tpu.vector_store %arg5[%c0_18, %c0_19, %c0_20, %c0_21], %48 {strides = array<i32>} : memref<1x1x48x128xf32, #tpu.memory_space<vmem>>, vector<1x1x8x128xf32>,
    %cst_22 = arith.constant 0.000000e+00 : f32
    %49 = vector.broadcast %cst_22 : f32 to vector<6x128xf32>
    %50 = tpu.concatenate %37, %49 in 0 : vector<2x128xf32>, vector<6x128xf32> -> vector<8x128xf32>
    %51 = vector.shape_cast %50 : vector<8x128xf32> to vector<1x8x128xf32>
    %cst_23 = arith.constant dense<0.000000e+00> : vector<8x128xf32>
    %52 = vector.multi_reduction <add>, %51, %cst_23 [0] : vector<1x8x128xf32> to vector<8x128xf32>
    %c0_24 = arith.constant 0 : index
    %c0_25 = arith.constant 0 : index
    %c8 = arith.constant 8 : index
    %c0_26 = arith.constant 0 : index
    %53 = vector.load %arg5[%c0_24, %c0_25, %c8, %c0_26] : memref<1x1x48x128xf32, #tpu.memory_space<vmem>>, vector<1x1x8x128xf32>
    %54 = vector.shape_cast %53 : vector<1x1x8x128xf32> to vector<8x128xf32>
    %55 = vector.shape_cast %52 : vector<8x128xf32> to vector<1x1x8x128xf32>
    tpu.vector_store %arg5[%c0_24, %c0_25, %c8, %c0_26], %55 {strides = array<i32>} : memref<1x1x48x128xf32, #tpu.memory_space<vmem>>, vector<1x1x8x128xf32>,
    %cst_27 = arith.constant 0.000000e+00 : f32
    %56 = vector.broadcast %cst_27 : f32 to vector<6x128xf32>
    %57 = tpu.concatenate %38, %56 in 0 : vector<2x128xf32>, vector<6x128xf32> -> vector<8x128xf32>
    %58 = vector.shape_cast %57 : vector<8x128xf32> to vector<1x8x128xf32>
    %cst_28 = arith.constant dense<0.000000e+00> : vector<8x128xf32>
    %59 = vector.multi_reduction <add>, %58, %cst_28 [0] : vector<1x8x128xf32> to vector<8x128xf32>
    %c0_29 = arith.constant 0 : index
    %c0_30 = arith.constant 0 : index
    %c16 = arith.constant 16 : index
    %c0_31 = arith.constant 0 : index
    %60 = vector.load %arg5[%c0_29, %c0_30, %c16, %c0_31] : memref<1x1x48x128xf32, #tpu.memory_space<vmem>>, vector<1x1x8x128xf32>
    %61 = vector.shape_cast %60 : vector<1x1x8x128xf32> to vector<8x128xf32>
    %62 = vector.shape_cast %59 : vector<8x128xf32> to vector<1x1x8x128xf32>
    tpu.vector_store %arg5[%c0_29, %c0_30, %c16, %c0_31], %62 {strides = array<i32>} : memref<1x1x48x128xf32, #tpu.memory_space<vmem>>, vector<1x1x8x128xf32>,
    %cst_32 = arith.constant 0.000000e+00 : f32
    %63 = vector.broadcast %cst_32 : f32 to vector<6x128xf32>
    %64 = tpu.concatenate %20, %63 in 0 : vector<2x128xf32>, vector<6x128xf32> -> vector<8x128xf32>
    %65 = vector.shape_cast %64 : vector<8x128xf32> to vector<1x8x128xf32>
    %cst_33 = arith.constant dense<0.000000e+00> : vector<8x128xf32>
    %66 = vector.multi_reduction <add>, %65, %cst_33 [0] : vector<1x8x128xf32> to vector<8x128xf32>
    %c0_34 = arith.constant 0 : index
    %c0_35 = arith.constant 0 : index
    %c24 = arith.constant 24 : index
    %c0_36 = arith.constant 0 : index
    %67 = vector.load %arg5[%c0_34, %c0_35, %c24, %c0_36] : memref<1x1x48x128xf32, #tpu.memory_space<vmem>>, vector<1x1x8x128xf32>
    %68 = vector.shape_cast %67 : vector<1x1x8x128xf32> to vector<8x128xf32>
    %69 = vector.shape_cast %66 : vector<8x128xf32> to vector<1x1x8x128xf32>
    tpu.vector_store %arg5[%c0_34, %c0_35, %c24, %c0_36], %69 {strides = array<i32>} : memref<1x1x48x128xf32, #tpu.memory_space<vmem>>, vector<1x1x8x128xf32>,
    %cst_37 = arith.constant 0.000000e+00 : f32
    %70 = vector.broadcast %cst_37 : f32 to vector<6x128xf32>
    %71 = tpu.concatenate %4, %70 in 0 : vector<2x128xf32>, vector<6x128xf32> -> vector<8x128xf32>
    %72 = vector.shape_cast %71 : vector<8x128xf32> to vector<1x8x128xf32>
    %cst_38 = arith.constant dense<0.000000e+00> : vector<8x128xf32>
    %73 = vector.multi_reduction <add>, %72, %cst_38 [0] : vector<1x8x128xf32> to vector<8x128xf32>
    %c0_39 = arith.constant 0 : index
    %c0_40 = arith.constant 0 : index
    %c32 = arith.constant 32 : index
    %c0_41 = arith.constant 0 : index
    %74 = vector.load %arg5[%c0_39, %c0_40, %c32, %c0_41] : memref<1x1x48x128xf32, #tpu.memory_space<vmem>>, vector<1x1x8x128xf32>
    %75 = vector.shape_cast %74 : vector<1x1x8x128xf32> to vector<8x128xf32>
    %76 = vector.shape_cast %73 : vector<8x128xf32> to vector<1x1x8x128xf32>
    tpu.vector_store %arg5[%c0_39, %c0_40, %c32, %c0_41], %76 {strides = array<i32>} : memref<1x1x48x128xf32, #tpu.memory_space<vmem>>, vector<1x1x8x128xf32>,
    %cst_42 = arith.constant 0.000000e+00 : f32
    %77 = vector.broadcast %cst_42 : f32 to vector<6x128xf32>
    %78 = tpu.concatenate %41, %77 in 0 : vector<2x128xf32>, vector<6x128xf32> -> vector<8x128xf32>
    %79 = vector.shape_cast %78 : vector<8x128xf32> to vector<1x8x128xf32>
    %cst_43 = arith.constant dense<0.000000e+00> : vector<8x128xf32>
    %80 = vector.multi_reduction <add>, %79, %cst_43 [0] : vector<1x8x128xf32> to vector<8x128xf32>
    %c0_44 = arith.constant 0 : index
    %c0_45 = arith.constant 0 : index
    %c40 = arith.constant 40 : index
    %c0_46 = arith.constant 0 : index
    %81 = vector.load %arg5[%c0_44, %c0_45, %c40, %c0_46] : memref<1x1x48x128xf32, #tpu.memory_space<vmem>>, vector<1x1x8x128xf32>
    %82 = vector.shape_cast %81 : vector<1x1x8x128xf32> to vector<8x128xf32>
    %83 = vector.shape_cast %80 : vector<8x128xf32> to vector<1x1x8x128xf32>
    tpu.vector_store %arg5[%c0_44, %c0_45, %c40, %c0_46], %83 {strides = array<i32>} : memref<1x1x48x128xf32, #tpu.memory_space<vmem>>, vector<1x1x8x128xf32>,
    return
  }
  func.func @transform_0(%arg0: i32, %arg1: i32) -> (i32, i32, i32) {
    %c0_i32 = arith.constant 0 : i32
    %c0_i32_0 = arith.constant 0 : i32
    return %arg0, %arg1, %c0_i32 : i32, i32, i32
  }
  func.func @transform_1(%arg0: i32, %arg1: i32) -> (i32, i32, i32) {
    %c0_i32 = arith.constant 0 : i32
    %c0_i32_0 = arith.constant 0 : i32
    return %arg0, %arg1, %c0_i32 : i32, i32, i32
  }
  func.func @transform_2(%arg0: i32, %arg1: i32) -> (i32, i32, i32) {
    %c0_i32 = arith.constant 0 : i32
    %c0_i32_0 = arith.constant 0 : i32
    return %arg0, %arg1, %c0_i32 : i32, i32, i32
  }
  func.func @transform_3(%arg0: i32, %arg1: i32) -> (i32, i32, i32, i32) {
    %c0_i32 = arith.constant 0 : i32
    %c0_i32_0 = arith.constant 0 : i32
    %c0_i32_1 = arith.constant 0 : i32
    return %arg0, %arg1, %c0_i32, %c0_i32_0 : i32, i32, i32, i32
  }
}

</mosaic_0001>

<llo_original>
// kernel: custom-call.1
$region0: #{custom-call.1}
  %s0 = inlined_call_operand.vmem [shape: f32[2,16], index: 0, kind: output, shape index: {}]

// kernel: combined_loss.1
$region0: #{combined_loss.1}
  #allocation0 [shape = 'u32[]', space=smem, size = 0x4, offset = 0x4, fixed_abs, tag = 'smem constant byte address 0x4 - core index']
  #allocation1 [shape = 'u32[144,128]{1,0:T(1,128)}', space=vmem, size = 0x12000, scoped, tag = 'internal scratch']
  %s0 = inlined_call_operand.vmem [shape: f32[2,2,128], index: 0, kind: input, shape index: {}]
  %s1 = inlined_call_operand.vmem [shape: bf16[2,2,128], index: 1, kind: input, shape index: {}]
  %s2 = inlined_call_operand.vmem [shape: bf16[2,2,128], index: 2, kind: input, shape index: {}]
  %s3 = inlined_call_operand.vmem [shape: f32[2,1,48,128], index: 3, kind: output, shape index: {}]
  %s4 = sld [smem:[#allocation0]]
  $region45: #{combined_loss.1} parent=0
    _
  %s6 = ssub.s32 1, %s4
  %s7 = scalar_select 0, %s6, %s4
  loop: start=0, step=1, limit=4
  $region2: #{combined_loss.1} parent=0 // loop_pre_header
    _
  $region3: #{combined_loss.1} parent=0 // loop_header
    %s9 = sphi 0, %s13
    %p10 = scmp.ge.s32.totalorder %s9, 4
    %s16 = sphi 0, %s28
    %s17 = sphi 0, %s24
    %s18 = sphi 0, %s16
    %s19 = sphi 0, %s17
    %s20 = sphi 0, %s18
    %s21 = sphi 0, %s19
    %s33 = sphi 0, %s35
    %s36 = sphi 0, %s33
    %s37 = sphi 0, %s36
    %s53 = sphi 0, %s37
    %s61 = sphi 0, %s63
    %s64 = sphi 0, %s61
    %s65 = sphi 0, %s64
    %s81 = sphi 0, %s65
    %s89 = sphi 0, %s91
    %s92 = sphi 0, %s89
    %s93 = sphi 0, %s92
    %s109 = sphi 0, %s93
    %s117 = sphi 0, %s119
    %s120 = sphi 0, %s117
    %s121 = sphi 0, %s120
    %s137 = sphi 0, %s121
  $region4: #{combined_loss.1} parent=0 // loop_header_branch
    %12 = sbr.rel (%p10) target = $region8
  $region5: #{combined_loss.1} parent=0 // loop_body
    %s14 = ssub.s32 %s9, 1
    %s15 = ssub.s32 %s9, 2
    %s22 = sadd.s32 1, %s17
    %p23 = scmp.ge.s32.totalorder %s22, 1
    %s24 = scalar_select %p23, 0, %s22
    %s25 = sadd.s32 1, %s16
    %s26 = scalar_select %p23, %s25, %s16
    %p27 = scmp.ge.s32.totalorder %s26, 2
    %s28 = scalar_select %p27, 0, %s26
    %s29 = ssub.s32 %s16, %s28
    %s30 = ssub.s32 %s17, %s24
    %s31 = sor.u32 %s29, %s30
    %p32 = scmp.eq.s32.totalorder %s31, 0
    %s34 = sadd.s32 %s33, 1
    %s35 = scalar_select %p32, %s33, %s34
    %p38 = pneg %p32
    %p39 = scmp.eq.s32.totalorder %s9, 1
    %p40 = por %p38, %p39
    %p41 = scmp.ne.s32.totalorder %s33, %s36
    %p42 = scmp.eq.s32.totalorder %s9, 0
    %p43 = por %p41, %p42
    %p44 = scmp.ne.s32.totalorder %s33, %s36
    %p45 = scmp.eq.s32.totalorder %s14, 1
    %p46 = por %p44, %p45
    %p47 = scmp.ne.s32.totalorder %s36, %s37
    %p48 = scmp.eq.s32.totalorder %s14, 0
    %p49 = por %p47, %p48
    %p50 = scmp.ne.s32.totalorder %s36, %s37
    %p51 = scmp.eq.s32.totalorder %s15, 1
    %p52 = por %p50, %p51
    %p54 = scmp.ne.s32.totalorder %s37, %s53
    %p55 = scmp.eq.s32.totalorder %s15, 0
    %p56 = por %p54, %p55
    %s57 = ssub.s32 %s16, %s28
    %s58 = ssub.s32 %s17, %s24
    %s59 = sor.u32 %s57, %s58
    %p60 = scmp.eq.s32.totalorder %s59, 0
    %s62 = sadd.s32 %s61, 1
    %s63 = scalar_select %p60, %s61, %s62
    %p66 = pneg %p60
    %p67 = scmp.eq.s32.totalorder %s9, 1
    %p68 = por %p66, %p67
    %p69 = scmp.ne.s32.totalorder %s61, %s64
    %p70 = scmp.eq.s32.totalorder %s9, 0
    %p71 = por %p69, %p70
    %p72 = scmp.ne.s32.totalorder %s61, %s64
    %p73 = scmp.eq.s32.totalorder %s14, 1
    %p74 = por %p72, %p73
    %p75 = scmp.ne.s32.totalorder %s64, %s65
    %p76 = scmp.eq.s32.totalorder %s14, 0
    %p77 = por %p75, %p76
    %p78 = scmp.ne.s32.totalorder %s64, %s65
    %p79 = scmp.eq.s32.totalorder %s15, 1
    %p80 = por %p78, %p79
    %p82 = scmp.ne.s32.totalorder %s65, %s81
    %p83 = scmp.eq.s32.totalorder %s15, 0
    %p84 = por %p82, %p83
    %s85 = ssub.s32 %s16, %s28
    %s86 = ssub.s32 %s17, %s24
    %s87 = sor.u32 %s85, %s86
    %p88 = scmp.eq.s32.totalorder %s87, 0
    %s90 = sadd.s32 %s89, 1
    %s91 = scalar_select %p88, %s89, %s90
    %p94 = pneg %p88
    %p95 = scmp.eq.s32.totalorder %s9, 1
    %p96 = por %p94, %p95
    %p97 = scmp.ne.s32.totalorder %s89, %s92
    %p98 = scmp.eq.s32.totalorder %s9, 0
    %p99 = por %p97, %p98
    %p100 = scmp.ne.s32.totalorder %s89, %s92
    %p101 = scmp.eq.s32.totalorder %s14, 1
    %p102 = por %p100, %p101
    %p103 = scmp.ne.s32.totalorder %s92, %s93
    %p104 = scmp.eq.s32.totalorder %s14, 0
    %p105 = por %p103, %p104
    %p106 = scmp.ne.s32.totalorder %s92, %s93
    %p107 = scmp.eq.s32.totalorder %s15, 1
    %p108 = por %p106, %p107
    %p110 = scmp.ne.s32.totalorder %s93, %s109
    %p111 = scmp.eq.s32.totalorder %s15, 0
    %p112 = por %p110, %p111
    %s113 = ssub.s32 %s16, %s28
    %s114 = ssub.s32 %s17, %s24
    %s115 = sor.u32 %s113, %s114
    %p116 = scmp.eq.s32.totalorder %s115, 0
    %s118 = sadd.s32 %s117, 1
    %s119 = scalar_select %p116, %s117, %s118
    %p122 = pneg %p116
    %p123 = scmp.eq.s32.totalorder %s9, 1
    %p124 = por %p122, %p123
    %p125 = scmp.ne.s32.totalorder %s117, %s120
    %p126 = scmp.eq.s32.totalorder %s9, 0
    %p127 = por %p125, %p126
    %p128 = scmp.ne.s32.totalorder %s117, %s120
    %p129 = scmp.eq.s32.totalorder %s14, 1
    %p130 = por %p128, %p129
    %p131 = scmp.ne.s32.totalorder %s120, %s121
    %p132 = scmp.eq.s32.totalorder %s14, 0
    %p133 = por %p131, %p132
    %p134 = scmp.ne.s32.totalorder %s120, %s121
    %p135 = scmp.eq.s32.totalorder %s15, 1
    %p136 = por %p134, %p135
    %p138 = scmp.ne.s32.totalorder %s121, %s137
    %p139 = scmp.eq.s32.totalorder %s15, 0
    %p140 = por %p138, %p139
    %p141 = scmp.le.s32.totalorder 1, %s9
    %p142 = scmp.lt.s32.totalorder %s9, 3
    %p143 = pnand %p141, %p142
    %p144 = pneg %p143
    // Predicated region
    $region9: #{combined_loss.1} parent=5 // pred_check
      _
    $region10: #{combined_loss.1} parent=5 // pred_check_branch
      %146 = sbr.rel (%p143) target = $region12
    $region11: #{combined_loss.1} parent=5 // pred_region
      %s147 = ssub.s32 %s9, 1
    $region12: #{combined_loss.1} parent=5 // pred_fallthru
      _
    %p148 = scmp.lt.s32.totalorder %s9, 2
    // Predicated region
    $region13: #{combined_loss.1} parent=5 // pred_check
      %p149 = pneg %p148
    $region14: #{combined_loss.1} parent=5 // pred_check_branch
      %151 = sbr.rel (%p149) target = $region16
    $region15: #{combined_loss.1} parent=5 // pred_region
      // Predicated region
      $region17: #{combined_loss.1} parent=15 // pred_check
        %p152 = pneg %p43
      $region18: #{combined_loss.1} parent=15 // pred_check_branch
        %154 = sbr.rel (%p152) target = $region20
      $region19: #{combined_loss.1} parent=15 // pred_region
        %p155 = scmp.lt.s32.totalorder %s16, 1
        %s156 = scalar_select %p155, %s16, 1
        %p157 = scmp.lt.s32.totalorder %s17, 0
        %s158 = scalar_select %p157, %s17, 0
        %s159 = sadd.s32 %s158, %s156
        %s160 = smul.addr %s159, 2
        %s161 = scalar_lea.vmem %s0, %s160
      $region20: #{combined_loss.1} parent=15 // pred_fallthru
        _
      // Predicated region
      $region21: #{combined_loss.1} parent=15 // pred_check
        %p162 = pneg %p71
      $region22: #{combined_loss.1} parent=15 // pred_check_branch
        %164 = sbr.rel (%p162) target = $region24
      $region23: #{combined_loss.1} parent=15 // pred_region
        %p165 = scmp.lt.s32.totalorder %s16, 1
        %s166 = scalar_select %p165, %s16, 1
        %p167 = scmp.lt.s32.totalorder %s17, 0
        %s168 = scalar_select %p167, %s17, 0
        %s169 = sadd.s32 %s168, %s166
        %s170 = scalar_lea.vmem %s1, %s169
      $region24: #{combined_loss.1} parent=15 // pred_fallthru
        _
      // Predicated region
      $region25: #{combined_loss.1} parent=15 // pred_check
        %p171 = pneg %p99
      $region26: #{combined_loss.1} parent=15 // pred_check_branch
        %173 = sbr.rel (%p171) target = $region28
      $region27: #{combined_loss.1} parent=15 // pred_region
        %p174 = scmp.lt.s32.totalorder %s16, 1
        %s175 = scalar_select %p174, %s16, 1
        %p176 = scmp.lt.s32.totalorder %s17, 0
        %s177 = scalar_select %p176, %s17, 0
        %s178 = sadd.s32 %s177, %s175
        %s179 = scalar_lea.vmem %s2, %s178
      $region28: #{combined_loss.1} parent=15 // pred_fallthru
        _
    $region16: #{combined_loss.1} parent=5 // pred_fallthru
      _
    %p180 = scmp.le.s32.totalorder 1, %s9
    %p181 = scmp.lt.s32.totalorder %s9, 3
    %p182 = pnand %p180, %p181
    %p183 = pneg %p182
    // Predicated region
    $region29: #{combined_loss.1} parent=5 // pred_check
      _
    $region30: #{combined_loss.1} parent=5 // pred_check_branch
      %185 = sbr.rel (%p182) target = $region32
    $region31: #{combined_loss.1} parent=5 // pred_region
      %s186 = ssub.s32 %s9, 1
      %p187 = scmp.lt.s32.totalorder %s18, 1
      %s188 = scalar_select %p187, %s18, 1
      %p189 = scmp.lt.s32.totalorder %s19, 0
      %s190 = scalar_select %p189, %s19, 0
      %s191 = sadd.s32 %s190, %s188
      %s192 = smul.addr %s191, 2
      %s193 = scalar_lea.vmem %s0, %s192
      %p194 = pneg %p49
      %p195 = pneg %p46
      %p196 = scmp.lt.s32.totalorder %s18, 1
      %s197 = scalar_select %p196, %s18, 1
      %p198 = scmp.lt.s32.totalorder %s19, 0
      %s199 = scalar_select %p198, %s19, 0
      %s200 = sadd.s32 %s199, %s197
      %s201 = scalar_lea.vmem %s1, %s200
      %p202 = pneg %p77
      %p203 = pneg %p74
      %p204 = scmp.lt.s32.totalorder %s18, 1
      %s205 = scalar_select %p204, %s18, 1
      %p206 = scmp.lt.s32.totalorder %s19, 0
      %s207 = scalar_select %p206, %s19, 0
      %s208 = sadd.s32 %s207, %s205
      %s209 = scalar_lea.vmem %s2, %s208
      %p210 = pneg %p105
      %p211 = pneg %p102
      %p212 = pneg %p133
      %p213 = pneg %p130
      %p214 = scmp.lt.s32.totalorder %s18, 1
      %s215 = scalar_select %p214, %s18, 1
      %p216 = scmp.lt.s32.totalorder %s19, 0
      %s217 = scalar_select %p216, %s19, 0
      %s218 = smul.addr %s217, 6
      %s219 = smul.addr %s215, 6
      %s220 = sadd.s32 %s218, %s219
      %s221 = smul.addr %s220, 8
      %s222 = scalar_lea.vmem %s3, %s221
      %p223 = scmp.lt.s32.totalorder %s18, 1
      %s224 = scalar_select %p223, %s18, 1
      %p225 = scmp.lt.s32.totalorder %s19, 0
      %s226 = scalar_select %p225, %s19, 0
      %s227 = sadd.s32 %s226, %s224
      %s228 = smul.addr %s227, 2
      %s229 = scalar_lea.vmem %s0, %s228
      %p230 = scmp.lt.s32.totalorder %s18, 1
      %s231 = scalar_select %p230, %s18, 1
      %p232 = scmp.lt.s32.totalorder %s19, 0
      %s233 = scalar_select %p232, %s19, 0
      %s234 = sadd.s32 %s233, %s231
      %s235 = scalar_lea.vmem %s1, %s234
      %p236 = scmp.lt.s32.totalorder %s18, 1
      %s237 = scalar_select %p236, %s18, 1
      %p238 = scmp.lt.s32.totalorder %s19, 0
      %s239 = scalar_select %p238, %s19, 0
      %s240 = sadd.s32 %s239, %s237
      %s241 = scalar_lea.vmem %s2, %s240
      %p242 = scmp.lt.s32.totalorder %s18, 1
      %s243 = scalar_select %p242, %s18, 1
      %p244 = scmp.lt.s32.totalorder %s19, 0
      %s245 = scalar_select %p244, %s19, 0
      %s246 = smul.addr %s245, 6
      %s247 = smul.addr %s243, 6
      %s248 = sadd.s32 %s246, %s247
      %s249 = smul.addr %s248, 8
      %s250 = scalar_lea.vmem %s3, %s249
      %v251 = vld [vmem:[%s229] sm:$0x3]
      %v252 = vld [vmem:[%s235] sm:$0x1]
      %v253 = vunpack.c.l.bf16 %v252
      %v254 = vld [vmem:[%s241] sm:$0x1]
      %v255 = vunpack.c.l.bf16 %v254
      %v256 = vand.u32 2147483647, %v251
      %v257 = vsub.f32 0.0, %v256
      %v258 = vmul.f32 %v257, 1.442695
      %v259 = vpow.pop %v258
      %v260 = vadd.f32 %v259, 1.0
      %v261 = vrcp.pop %v260
      %v262 = vmul.f32 1.0, %v261
      %vm263 = vcmp.ge.f32.partialorder %v251, 0.0
      %v264 = vsub.f32 1.0, %v262
      %v265 = vsel %vm263, %v262, %v264
      %v266 = vmax.f32 %v251, 0.0
      %v267 = vmul.f32 %v251, %v253
      %v268 = vsub.f32 %v266, %v267
      %v269 = vadd.f32 %v259, 1.0
      %v270 = vlog2.pop %v269
      %v271 = vmul.f32 %v270, 0.6931472
      %v272 = vmul.f32 -0.5, %v259
      %v273 = vadd.f32 %v272, 1.0
      %v274 = vmul.f32 %v273, %v259
      %v275 = vand.u32 2147483647, %v259
      %vm276 = vcmp.lt.f32.partialorder %v275, 0.0004427343
      %v277 = vsel %vm276, %v274, %v271
      %v278 = vadd.f32 %v268, %v277
      %v279 = vmul.f32 %v253, %v265
      %v280 = vsub.f32 1.0, %v253
      %v281 = vsub.f32 1.0, %v265
      %v282 = vmul.f32 %v280, %v281
      %v283 = vadd.f32 %v279, %v282
      %v284 = vsub.f32 1.0, %v283
      %v285 = vmul.f32 %v284, %v284
      %v286 = vmul.f32 %v285, %v278
      %v287 = vsub.f32 %v265, %v253
      %v288 = vand.u32 2147483647, %v287
      %v289 = vmul.f32 %v255, %v288
      %vm290 = vcmask 1041408
      %v291 = vsel %vm290, %v278, 0.0
      %v292 = vadd.f32 %v291, 0.0
      %293 = vst [vmem:[%s250] sm:$0xff] %v292
      %v294 = vsel %vm290, %v286, 0.0
      %v295 = vadd.f32 %v294, 0.0
      %296 = vst [vmem:[%s250 + $0x8] sm:$0xff] %v295
      %v297 = vsel %vm290, %v279, 0.0
      %v298 = vadd.f32 %v297, 0.0
      %299 = vst [vmem:[%s250 + $0x10] sm:$0xff] %v298
      %v300 = vsel %vm290, %v265, 0.0
      %v301 = vadd.f32 %v300, 0.0
      %302 = vst [vmem:[%s250 + $0x18] sm:$0xff] %v301
      %v303 = vsel %vm290, %v253, 0.0
      %v304 = vadd.f32 %v303, 0.0
      %305 = vst [vmem:[%s250 + $0x20] sm:$0xff] %v304
      %v306 = vsel %vm290, %v289, 0.0
      %v307 = vadd.f32 %v306, 0.0
      %308 = vst [vmem:[%s250 + $0x28] sm:$0xff] %v307
      %p309 = scmp.lt.s32.totalorder %s18, 1
      %s310 = scalar_select %p309, %s18, 1
      %p311 = scmp.lt.s32.totalorder %s19, 0
      %s312 = scalar_select %p311, %s19, 0
      %s313 = smul.addr %s312, 6
      %s314 = smul.addr %s310, 6
      %s315 = sadd.s32 %s313, %s314
      %s316 = smul.addr %s315, 8
      %s317 = scalar_lea.vmem %s3, %s316
      // Predicated region
      $region33: #{combined_loss.1} parent=31 // pred_check
        %p318 = pneg %p130
      $region34: #{combined_loss.1} parent=31 // pred_check_branch
        %320 = sbr.rel (%p318) target = $region36
      $region35: #{combined_loss.1} parent=31 // pred_region
        _
      $region36: #{combined_loss.1} parent=31 // pred_fallthru
        _
    $region32: #{combined_loss.1} parent=5 // pred_fallthru
      _
    %p321 = scmp.le.s32.totalorder 2, %s9
    // Predicated region
    $region37: #{combined_loss.1} parent=5 // pred_check
      %p322 = pneg %p321
    $region38: #{combined_loss.1} parent=5 // pred_check_branch
      %324 = sbr.rel (%p322) target = $region40
    $region39: #{combined_loss.1} parent=5 // pred_region
      %s325 = ssub.s32 %s9, 2
      // Predicated region
      $region41: #{combined_loss.1} parent=39 // pred_check
        %p326 = pneg %p136
      $region42: #{combined_loss.1} parent=39 // pred_check_branch
        %328 = sbr.rel (%p326) target = $region44
      $region43: #{combined_loss.1} parent=39 // pred_region
        %p329 = scmp.lt.s32.totalorder %s20, 1
        %s330 = scalar_select %p329, %s20, 1
        %p331 = scmp.lt.s32.totalorder %s21, 0
        %s332 = scalar_select %p331, %s21, 0
        %s333 = smul.addr %s332, 6
        %s334 = smul.addr %s330, 6
        %s335 = sadd.s32 %s333, %s334
        %s336 = smul.addr %s335, 8
        %s337 = scalar_lea.vmem %s3, %s336
      $region44: #{combined_loss.1} parent=39 // pred_fallthru
        _
    $region40: #{combined_loss.1} parent=5 // pred_fallthru
      _
  $region6: #{combined_loss.1} parent=0 // loop_footer
    %s13 = sadd.s32 1, %s9
  $region7: #{combined_loss.1} parent=0 // loop_footer_branch
    %8 = sbr.rel target = $region3
  $region8: #{combined_loss.1} parent=0 // loop_exit
    _

</llo_original>
